<compile_context>
chip_gen: v7x
topology: tpu7x:2x2x1
jax: 0.10.0
libtpu: 0.0.40
codegen_flags: <defaults>
</compile_context>

<pallas_src>
import functools

import jax
import jax.numpy as jnp
from jax.experimental import pallas as pl
from jax.experimental.pallas import tpu as pltpu


def _round_up(x, m):
    return (x + m - 1) // m * m


def _round_down(x, m):
    return x // m * m


def _cdiv(a, b):
    return -(-a // b)


# Conservative working-set budget for the per-step tiles (inputs double
# buffered + output double buffered + f32 accumulator).  Chosen so that the
# same tiling fits v7x's 64 MiB physical VMEM with headroom; v5e/v6e simply
# have more slack.
_VMEM_TILE_BUDGET = 40 * 1024 * 1024


# --------------------------------------------------------------------------
# Kernels
# --------------------------------------------------------------------------
def _isomax_mxu_kernel(x_ref, p_ref, o_ref, acc_ref, *, neg_inv_t):
    """Accumulate ||x_k||^2 + ||p_k||^2 - 2 x_k.p_k over the K (feature) axis."""
    k = pl.program_id(2)

    @pl.when(k == 0)
    def _init():
        acc_ref[...] = jnp.zeros_like(acc_ref)

    x = x_ref[...]                                       # (tb, tf)
    p = p_ref[...]                                       # (tc, tf)

    # Cross term on the MXU, f32 accumulation.
    xp = jax.lax.dot_general(
        x, p,
        dimension_numbers=(((1,), (1,)), ((), ())),
        preferred_element_type=jnp.float32)              # (tb, tc)

    # Partial squared norms for this feature chunk, from the tiles already in
    # VMEM (no extra HBM pass, no separate norm operands).
    x32 = x.astype(jnp.float32)
    p32 = p.astype(jnp.float32)
    xsq = jnp.sum(x32 * x32, axis=1, keepdims=True)      # (tb, 1) lane-reduce
    # ||p_k||^2 produced lane-oriented directly as a (1, tc) row via a skinny
    # MXU matmul with a ones row (avoids a sublane->lane relayout).
    ones_row = jnp.ones((1, p32.shape[1]), dtype=jnp.float32)
    psq = jax.lax.dot_general(
        ones_row, p32 * p32,
        dimension_numbers=(((1,), (1,)), ((), ())),
        preferred_element_type=jnp.float32)              # (1, tc)

    acc_ref[...] += (xsq - 2.0 * xp) + psq

    @pl.when(k == pl.num_programs(2) - 1)
    def _finalize():
        sq = jnp.maximum(acc_ref[...], 0.0)              # guard cancellation
        o_ref[...] = (jnp.sqrt(sq) * neg_inv_t).astype(o_ref.dtype)


def _isomax_exact_kernel(x_ref, p_ref, o_ref, acc_ref, *, neg_inv_t, c_chunk):
    """Exact broadcast-squared-difference form; intermediate bounded to
    (tb, c_chunk, tf) and the feature axis tiled by the K grid axis."""
    k = pl.program_id(2)

    @pl.when(k == 0)
    def _init():
        acc_ref[...] = jnp.zeros_like(acc_ref)

    x = x_ref[...].astype(jnp.float32)                   # (tb, tf)
    p = p_ref[...].astype(jnp.float32)                   # (tc, tf)
    tc = p.shape[0]

    parts = []
    for cc in range(0, tc, c_chunk):                     # static sub-chunks
        pc = p[cc:cc + c_chunk, :]                       # (c_chunk, tf)
        diff = x[:, None, :] - pc[None, :, :]            # (tb, c_chunk, tf)
        parts.append(jnp.sum(diff * diff, axis=-1))      # (tb, c_chunk)
    acc_ref[...] += jnp.concatenate(parts, axis=-1)      # lane-dense update

    @pl.when(k == pl.num_programs(2) - 1)
    def _finalize():
        sq = jnp.maximum(acc_ref[...], 0.0)
        o_ref[...] = (jnp.sqrt(sq) * neg_inv_t).astype(o_ref.dtype)


# --------------------------------------------------------------------------
# Tile selection / wrapper
# --------------------------------------------------------------------------
def _select_tiles(B, C, F_pad, in_bytes, out_bytes, *, exact):
    # Dtype-aware sublane packing for the batch (second-minor) axis.
    sub = {4: 8, 2: 16, 1: 32}.get(in_bytes, 8)

    if exact:
        block_b = min(_round_up(B, sub), 64)
        block_c = min(_round_up(C, 128), 128)
        block_f = min(F_pad, 512)
        return block_b, block_c, block_f, sub

    block_b = min(_round_up(B, sub), 256)
    # Class tile: multiple of 128; multiples of 256 when possible (v6e/v7x MXU
    # is 2x256^2).  Allow up to 2048 so typical prototype matrices become
    # fully VMEM-resident (constant block index -> DMA'd once).
    block_c = min(_round_up(C, 128), 2048)
    if block_c >= 256:
        block_c = min(_round_up(block_c, 256), 2048)

    def max_block_f(bb, bc):
        fixed = (2 * out_bytes + 4) * bb * bc            # dbuf output + f32 acc
        avail = max(_VMEM_TILE_BUDGET - fixed, 0)
        return _round_down(avail // (2 * in_bytes * (bb + bc)), 128)

    # Shrink tiles until at least a 128-wide feature chunk fits the budget.
    while max_block_f(block_b, block_c) < 128:
        if block_c > 256:
            block_c = max(_round_down(block_c // 2, 256), 256)
        elif block_c > 128:
            block_c = 128
        elif block_b > sub:
            block_b = max(_round_down(block_b // 2, sub), sub)
        else:
            break

    block_f = min(F_pad, max(max_block_f(block_b, block_c), 128))
    return block_b, block_c, block_f, sub


def _vmem_footprint(tb, tc, tf, in_bytes, out_bytes):
    return (2 * (tb + tc) * tf * in_bytes        # double-buffered input tiles
            + 2 * tb * tc * out_bytes            # double-buffered output tile
            + tb * tc * 4)                       # f32 accumulator scratch


def isomax_first_part(features, prototypes, temperature=1.0, *,
                      block_b=None, block_c=None, block_f=None,
                      matmul_dtype=None, exact=False, out_dtype=None):
    """features: (B, F), prototypes: (C, F) -> logits (B, C).

    matmul_dtype=jnp.bfloat16 selects the bf16 MXU fast path (halves streamed
    bytes); default keeps the input dtype.  exact=True uses the
    broadcast-squared-difference form (bit-faithful to torch's
    compute_mode='donot_use_mm_for_euclid_dist').
    """
    B, F = features.shape
    C, F2 = prototypes.shape
    assert F == F2, "feature dims must match"

    if out_dtype is None:
        out_dtype = features.dtype
    neg_inv_t = -1.0 / float(temperature)

    in_dtype = jnp.dtype(matmul_dtype) if matmul_dtype is not None else jnp.dtype(features.dtype)
    in_bytes = in_dtype.itemsize
    out_bytes = jnp.dtype(out_dtype).itemsize

    F_pad = _round_up(F, 128)            # lane-dense contraction axis

    tb, tc, tf, sub = _select_tiles(B, C, F_pad, in_bytes, out_bytes, exact=exact)
    if block_b is not None:
        tb = _round_up(block_b, sub)
    if block_c is not None:
        tc = _round_up(block_c, 128)
    if block_f is not None:
        tf = min(_round_up(block_f, 128), F_pad)

    B_pad = _round_up(B, tb)
    C_pad = _round_up(C, tc)

    # v7x megacore: if the whole problem fits a single (parallel) tile, split
    # the batch axis so both TensorCores get work.
    if block_b is None and B_pad == tb and C_pad == tc:
        tb_half = _round_up((B + 1) // 2, sub)
        if tb_half < tb:
            tb = tb_half
            B_pad = _round_up(B, tb)

    # Balance the feature (K) chunks and pad F to a multiple of the chunk.
    nk = _cdiv(F_pad, tf)
    tf = _round_up(_cdiv(F_pad, nk), 128)
    F_tot = nk * tf

    def _prep(a, rows_pad, cols_pad):
        if a.dtype != in_dtype:
            a = a.astype(in_dtype)
        pr, pc = rows_pad - a.shape[0], cols_pad - a.shape[1]
        if pr or pc:
            a = jnp.pad(a, ((0, pr), (0, pc)))           # fusible, exact (zeros)
        return a

    f = _prep(features, B_pad, F_tot)
    p = _prep(prototypes, C_pad, F_tot)

    grid = (B_pad // tb, C_pad // tc, F_tot // tf)

    if exact:
        kernel = functools.partial(_isomax_exact_kernel, neg_inv_t=neg_inv_t,
                                   c_chunk=min(8, tc))
        flops = 3 * B_pad * C_pad * F_tot
    else:
        kernel = functools.partial(_isomax_mxu_kernel, neg_inv_t=neg_inv_t)
        flops = 2 * B_pad * C_pad * F_tot + 6 * B_pad * C_pad

    footprint = _vmem_footprint(tb, tc, tf, in_bytes, out_bytes)
    vmem_limit = min(max(footprint + (8 << 20), 32 << 20), 56 << 20)

    out = pl.pallas_call(
        kernel,
        out_shape=jax.ShapeDtypeStruct((B_pad, C_pad), out_dtype),
        grid_spec=pltpu.PrefetchScalarGridSpec(
            num_scalar_prefetch=0,
            grid=grid,
            in_specs=[
                pl.BlockSpec((tb, tf), lambda i, j, k: (i, k)),   # features tile
                pl.BlockSpec((tc, tf), lambda i, j, k: (j, k)),   # prototypes tile
            ],
            out_specs=pl.BlockSpec((tb, tc), lambda i, j, k: (i, j)),
            scratch_shapes=[pltpu.VMEM((tb, tc), jnp.float32)],   # sq-dist accumulator
        ),
        compiler_params=pltpu.CompilerParams(
            dimension_semantics=("parallel", "parallel", "arbitrary"),
            vmem_limit_bytes=vmem_limit),
        cost_estimate=pl.CostEstimate(
            flops=flops,
            transcendentals=B_pad * C_pad,
            bytes_accessed=(B_pad * F_tot + C_pad * F_tot) * in_bytes
                           + B_pad * C_pad * out_bytes),
    )(f, p)

    return out[:B, :C]


# --------------------------------------------------------------------------
# Self-test
# --------------------------------------------------------------------------
if __name__ == "__main__":
    # Module configuration (synthetic, deterministic init).
    num_features = 32
    num_classes = 16
    temperature = 1.0
    batch = 8

    key = jax.random.PRNGKey(0)
    kx, kp = jax.random.split(key)
    features = jax.random.normal(kx, (batch, num_features), dtype=jnp.float32)

    # nn.init.constant_(self.prototypes, 0.0)
    prototypes = jnp.zeros((num_classes, num_features), dtype=jnp.float32)

    def ref_fn(x, pr, t):
        d = x[:, None, :] - pr[None, :, :]
        return -jnp.sqrt(jnp.sum(d * d, axis=-1)) / t

    # 1) Module as initialized (zero prototypes): cross term is exactly zero,
    #    so the MXU-form path matches the reference tightly.
    logits = jax.block_until_ready(isomax_first_part(features, prototypes, temperature))
    ref = ref_fn(features, prototypes, temperature)
    assert logits.shape == (batch, num_classes)
    assert jnp.allclose(logits, ref, atol=1e-4, rtol=1e-4), "mismatch (zero prototypes)"

    # 2) General forward path with trained (non-zero) prototypes.
    protos2 = 0.5 * jax.random.normal(kp, (num_classes, num_features), dtype=jnp.float32)
    ref2 = ref_fn(features, protos2, temperature)

    out_mxu = jax.block_until_ready(isomax_first_part(features, protos2, temperature))
    assert jnp.allclose(out_mxu, ref2, atol=1e-2, rtol=1e-2), "mismatch (f32 MXU form)"

    out_bf16 = jax.block_until_ready(
        isomax_first_part(features, protos2, temperature, matmul_dtype=jnp.bfloat16))
    assert jnp.allclose(out_bf16, ref2, atol=5e-2, rtol=5e-2), "mismatch (bf16 MXU form)"

    out_exact = jax.block_until_ready(
        isomax_first_part(features, protos2, temperature, exact=True))
    assert jnp.allclose(out_exact, ref2, atol=1e-5, rtol=1e-5), "mismatch (exact form)"

    print("KERNEL_OK")
</pallas_src>

<mosaic_0001>
module attributes {stable_mosaic.version = 11 : i64} {
  func.func @_isomax_mxu_kernel(%arg0: i32, %arg1: i32, %arg2: i32, %arg3: memref<8x128xf32, #tpu.memory_space<vmem>>, %arg4: memref<128x128xf32, #tpu.memory_space<vmem>>, %arg5: memref<8x128xf32, #tpu.memory_space<vmem>>, %arg6: memref<8x128xf32, #tpu.memory_space<vmem>>) attributes {dimension_semantics = [#tpu.dimension_semantics<parallel>, #tpu.dimension_semantics<parallel>, #tpu.dimension_semantics<arbitrary>], iteration_bounds = array<i64: 1, 1, 1>, scalar_prefetch = 0 : i64, scratch_operands = 1 : i64, tpu.core_type = #tpu.core_type<tc>, window_params = [{transform_indices = @transform_0, window_bounds = array<i64: 8, 128>}, {transform_indices = @transform_1, window_bounds = array<i64: 128, 128>}, {transform_indices = @transform_2, window_bounds = array<i64: 8, 128>}]} {
    %c0_i32 = arith.constant 0 : i32
    %0 = arith.cmpi eq, %arg2, %c0_i32 : i32
    %1 = arith.extui %0 : i1 to i32
    %c0_i32_0 = arith.constant 0 : i32
    %2 = arith.cmpi ne, %1, %c0_i32_0 : i32
    scf.if %2 {
      %cst_14 = arith.constant 0.000000e+00 : f32
      %24 = vector.broadcast %cst_14 : f32 to vector<8x128xf32>
      %c0_15 = arith.constant 0 : index
      %c0_16 = arith.constant 0 : index
      %25 = vector.load %arg6[%c0_15, %c0_16] : memref<8x128xf32, #tpu.memory_space<vmem>>, vector<8x128xf32>
      tpu.vector_store %arg6[%c0_15, %c0_16], %24 {strides = array<i32>} : memref<8x128xf32, #tpu.memory_space<vmem>>, vector<8x128xf32>,
    } else {
    }
    %c0 = arith.constant 0 : index
    %c0_1 = arith.constant 0 : index
    %3 = vector.load %arg3[%c0, %c0_1] : memref<8x128xf32, #tpu.memory_space<vmem>>, vector<8x128xf32>
    %c0_2 = arith.constant 0 : index
    %c0_3 = arith.constant 0 : index
    %4 = vector.load %arg4[%c0_2, %c0_3] : memref<128x128xf32, #tpu.memory_space<vmem>>, vector<128x128xf32>
    %cst = arith.constant dense<0.000000e+00> : vector<8x128xf32>
    %5 = tpu.matmul %3, %4, %cst {dimension_numbers = #tpu.dot_dimension_numbers<[1], [1], [0], [0], [0, 0, 1, 0], [], []>} : vector<8x128xf32>, vector<128x128xf32>, vector<8x128xf32> -> vector<8x128xf32>
    %6 = arith.mulf %3, %3 : vector<8x128xf32>
    %cst_4 = arith.constant dense<0.000000e+00> : vector<8xf32>
    %7 = vector.multi_reduction <add>, %6, %cst_4 [1] : vector<8x128xf32> to vector<8xf32>
    %8 = vector.shape_cast %7 : vector<8xf32> to vector<8x1xf32>
    %cst_5 = arith.constant 1.000000e+00 : f32
    %9 = vector.broadcast %cst_5 : f32 to vector<1x128xf32>
    %10 = arith.mulf %4, %4 : vector<128x128xf32>
    %cst_6 = arith.constant dense<0.000000e+00> : vector<1x128xf32>
    %11 = tpu.matmul %9, %10, %cst_6 {dimension_numbers = #tpu.dot_dimension_numbers<[1], [1], [0], [0], [0, 0, 1, 0], [], []>} : vector<1x128xf32>, vector<128x128xf32>, vector<1x128xf32> -> vector<1x128xf32>
    %c0_7 = arith.constant 0 : index
    %c0_8 = arith.constant 0 : index
    %12 = vector.load %arg6[%c0_7, %c0_8] : memref<8x128xf32, #tpu.memory_space<vmem>>, vector<8x128xf32>
    %cst_9 = arith.constant 2.000000e+00 : f32
    %13 = vector.broadcast %cst_9 : f32 to vector<8x128xf32>
    %14 = arith.mulf %13, %5 : vector<8x128xf32>
    %15 = vector.broadcast %8 : vector<8x1xf32> to vector<8x128xf32>
    %16 = arith.subf %15, %14 : vector<8x128xf32>
    %17 = vector.broadcast %11 : vector<1x128xf32> to vector<8x128xf32>
    %18 = arith.addf %16, %17 : vector<8x128xf32>
    %19 = arith.addf %12, %18 : vector<8x128xf32>
    %c0_10 = arith.constant 0 : index
    %c0_11 = arith.constant 0 : index
    %20 = vector.load %arg6[%c0_10, %c0_11] : memref<8x128xf32, #tpu.memory_space<vmem>>, vector<8x128xf32>
    tpu.vector_store %arg6[%c0_10, %c0_11], %19 {strides = array<i32>} : memref<8x128xf32, #tpu.memory_space<vmem>>, vector<8x128xf32>,
    %c0_i32_12 = arith.constant 0 : i32
    %21 = arith.cmpi eq, %arg2, %c0_i32_12 : i32
    %22 = arith.extui %21 : i1 to i32
    %c0_i32_13 = arith.constant 0 : i32
    %23 = arith.cmpi ne, %22, %c0_i32_13 : i32
    scf.if %23 {
      %c0_14 = arith.constant 0 : index
      %c0_15 = arith.constant 0 : index
      %24 = vector.load %arg6[%c0_14, %c0_15] : memref<8x128xf32, #tpu.memory_space<vmem>>, vector<8x128xf32>
      %cst_16 = arith.constant 0.000000e+00 : f32
      %25 = vector.broadcast %cst_16 : f32 to vector<8x128xf32>
      %26 = arith.maximumf %24, %25 : vector<8x128xf32>
      %27 = math.sqrt %26 : vector<8x128xf32>
      %cst_17 = arith.constant -1.000000e+00 : f32
      %28 = vector.broadcast %cst_17 : f32 to vector<8x128xf32>
      %29 = arith.mulf %27, %28 : vector<8x128xf32>
      %c0_18 = arith.constant 0 : index
      %c0_19 = arith.constant 0 : index
      %30 = vector.load %arg5[%c0_18, %c0_19] : memref<8x128xf32, #tpu.memory_space<vmem>>, vector<8x128xf32>
      tpu.vector_store %arg5[%c0_18, %c0_19], %29 {strides = array<i32>} : memref<8x128xf32, #tpu.memory_space<vmem>>, vector<8x128xf32>,
    } else {
    }
    return
  }
  func.func @transform_0(%arg0: i32, %arg1: i32, %arg2: i32) -> (i32, i32) {
    %c0_i32 = arith.constant 0 : i32
    return %arg0, %arg2 : i32, i32
  }
  func.func @transform_1(%arg0: i32, %arg1: i32, %arg2: i32) -> (i32, i32) {
    %c0_i32 = arith.constant 0 : i32
    return %arg1, %arg2 : i32, i32
  }
  func.func @transform_2(%arg0: i32, %arg1: i32, %arg2: i32) -> (i32, i32) {
    %c0_i32 = arith.constant 0 : i32
    return %arg0, %arg1 : i32, i32
  }
}

</mosaic_0001>

<llo_original>
// kernel: tpu_custom_call.1
$region0: #{tpu_custom_call.1}
  #allocation0 [shape = 'u32[]', space=smem, size = 0x4, offset = 0x4, fixed_abs, tag = 'smem constant byte address 0x4 - core index']
  #allocation1 [shape = 'u32[144,128]{1,0:T(1,128)}', space=vmem, size = 0x12000, scoped, tag = 'internal scratch']
  #allocation2 [shape = 'f32[8,128]{1,0:T(8,128)}', space=vmem, size = 0x1000, scoped, tag = 'scratch operand']
  %s0 = inlined_call_operand.hbm [shape: f32[8,128], index: 0, kind: input, shape index: {}]
  %s1 = inlined_call_operand.hbm [shape: f32[128,128], index: 1, kind: input, shape index: {}]
  %s2 = inlined_call_operand.hbm [shape: f32[8,128], index: 2, kind: output, shape index: {}]
  %s3 = sld [smem:[#allocation0]]
  $region34: #{tpu_custom_call.1} parent=0
    _
  %s5 = ssub.s32 1, %s3
  %s6 = scalar_select 0, %s5, %s3
  $region1: #{tpu_custom_call.1} parent=0
    #allocation3 [shape = 'u8[4096]{0}', space=vmem, size = 0x1000, scoped, tag = 'input window, operand 0, single buffered']
    #allocation4 [shape = 's32[1]{0}', space=sflag, size = 0x4, scoped, tag = 'scoped memory for tpu_custom_call.1']
    #allocation5 [shape = 's32[1]{0}', space=sflag, size = 0x4, scoped, tag = 'scoped memory for tpu_custom_call.1']
    #allocation6 [shape = 'u8[65536]{0}', space=vmem, size = 0x10000, scoped, tag = 'input window, operand 1, single buffered']
    #allocation7 [shape = 's32[1]{0}', space=sflag, size = 0x4, scoped, tag = 'scoped memory for tpu_custom_call.1']
    #allocation8 [shape = 'u8[4096]{0}', space=vmem, size = 0x1000, scoped, tag = 'output window, operand 0, single buffered']
    %7 = vsyncpa [#allocation4], 0
    %8 = vsyncpa [#allocation7], 0
    %9 = vsyncpa [#allocation5], 0
    // Predicated region
    $region2: #{tpu_custom_call.1} parent=1 // pred_check
      _
    $region3: #{tpu_custom_call.1} parent=1 // pred_check_branch
      %11 = sbr.rel (0) target = $region5
    $region4: #{tpu_custom_call.1} parent=1 // pred_region
      %s13 = ssub.s32 128, 128
      %14 = vsyncadd [#allocation4], %s13
      %s16 = sshll.u32 [#allocation3], 4
      %s17 = int_to_ptr.vmem [resolvable:$true] %s16
      %19 = dma.hbm_to_vmem [thread:$0]  %s0, 128, %s17, [#allocation4]
    $region5: #{tpu_custom_call.1} parent=1 // pred_fallthru
      _
    // Predicated region
    $region6: #{tpu_custom_call.1} parent=1 // pred_check
      _
    $region7: #{tpu_custom_call.1} parent=1 // pred_check_branch
      %21 = sbr.rel (0) target = $region9
    $region8: #{tpu_custom_call.1} parent=1 // pred_region
      %s23 = ssub.s32 2048, 2048
      %24 = vsyncadd [#allocation7], %s23
      %s25 = sshll.u32 [#allocation6], 4
      %s26 = int_to_ptr.vmem [resolvable:$true] %s25
      %31 = dma.hbm_to_vmem [thread:$0]  %s1, 2048, %s26, [#allocation7], 128, 128, 8
    $region9: #{tpu_custom_call.1} parent=1 // pred_fallthru
      _
    // Predicated region
    $region10: #{tpu_custom_call.1} parent=1 // pred_check
      _
    $region11: #{tpu_custom_call.1} parent=1 // pred_check_branch
      %33 = sbr.rel (0) target = $region13
    $region12: #{tpu_custom_call.1} parent=1 // pred_region
      %34 = dma.done [#allocation4], 128
    $region13: #{tpu_custom_call.1} parent=1 // pred_fallthru
      _
    // Predicated region
    $region14: #{tpu_custom_call.1} parent=1 // pred_check
      _
    $region15: #{tpu_custom_call.1} parent=1 // pred_check_branch
      %36 = sbr.rel (0) target = $region17
    $region16: #{tpu_custom_call.1} parent=1 // pred_region
      %37 = dma.done [#allocation7], 2048
    $region17: #{tpu_custom_call.1} parent=1 // pred_fallthru
      _
    %p38 = scmp.eq.s32.totalorder 0, 0
    // Predicated region
    $region18: #{tpu_custom_call.1} parent=1 // pred_check
      %p39 = pneg %p38
    $region19: #{tpu_custom_call.1} parent=1 // pred_check_branch
      %41 = sbr.rel (%p39) target = $region21
    $region20: #{tpu_custom_call.1} parent=1 // pred_region
      %42 = vst [vmem:[#allocation2] sm:$0xff] 0.0
    $region21: #{tpu_custom_call.1} parent=1 // pred_fallthru
      _
    %v43 = vld [vmem:[#allocation3] sm:$0xff]
    %v44 = vld [vmem:[#allocation6] sm:$0xff]
    %v45 = vld [vmem:[#allocation6 + $0x8] sm:$0xff]
    %v46 = vld [vmem:[#allocation6 + $0x10] sm:$0xff]
    %v47 = vld [vmem:[#allocation6 + $0x18] sm:$0xff]
    %v48 = vld [vmem:[#allocation6 + $0x20] sm:$0xff]
    %v49 = vld [vmem:[#allocation6 + $0x28] sm:$0xff]
    %v50 = vld [vmem:[#allocation6 + $0x30] sm:$0xff]
    %v51 = vld [vmem:[#allocation6 + $0x38] sm:$0xff]
    %v52 = vld [vmem:[#allocation6 + $0x40] sm:$0xff]
    %v53 = vld [vmem:[#allocation6 + $0x48] sm:$0xff]
    %v54 = vld [vmem:[#allocation6 + $0x50] sm:$0xff]
    %v55 = vld [vmem:[#allocation6 + $0x58] sm:$0xff]
    %v56 = vld [vmem:[#allocation6 + $0x60] sm:$0xff]
    %v57 = vld [vmem:[#allocation6 + $0x68] sm:$0xff]
    %v58 = vld [vmem:[#allocation6 + $0x70] sm:$0xff]
    %v59 = vld [vmem:[#allocation6 + $0x78] sm:$0xff]
    %60 = vmatprep.subr.mxu0 0.0
    %61 = vmatpush1.xpose.msra.mxu0 %v44
    %62 = vmatprep.subr.mxu0 0.0
    %63 = vmatpush1.xpose.msra.mxu0 %v45
    %64 = vmatprep.subr.mxu0 0.0
    %65 = vmatpush1.xpose.msra.mxu0 %v46
    %66 = vmatprep.subr.mxu0 0.0
    %67 = vmatpush1.xpose.msra.mxu0 %v47
    %68 = vmatprep.subr.mxu0 0.0
    %69 = vmatpush1.xpose.msra.mxu0 %v48
    %70 = vmatprep.subr.mxu0 0.0
    %71 = vmatpush1.xpose.msra.mxu0 %v49
    %72 = vmatprep.subr.mxu0 0.0
    %73 = vmatpush1.xpose.msra.mxu0 %v50
    %74 = vmatprep.subr.mxu0 0.0
    %75 = vmatpush1.xpose.msra.mxu0 %v51
    %76 = vmatprep.subr.mxu0 0.0
    %77 = vmatpush1.xpose.msra.mxu0 %v52
    %78 = vmatprep.subr.mxu0 0.0
    %79 = vmatpush1.xpose.msra.mxu0 %v53
    %80 = vmatprep.subr.mxu0 0.0
    %81 = vmatpush1.xpose.msra.mxu0 %v54
    %82 = vmatprep.subr.mxu0 0.0
    %83 = vmatpush1.xpose.msra.mxu0 %v55
    %84 = vmatprep.subr.mxu0 0.0
    %85 = vmatpush1.xpose.msra.mxu0 %v56
    %86 = vmatprep.subr.mxu0 0.0
    %87 = vmatpush1.xpose.msra.mxu0 %v57
    %88 = vmatprep.subr.mxu0 0.0
    %89 = vmatpush1.xpose.msra.mxu0 %v58
    %90 = vmatprep.subr.mxu0 0.0
    %91 = vmatpush1.xpose.msra.mxu0 %v59
    %92 = vmatprep.subr.mxu0 0.0
    %93 = vmatpush1.xpose.msra.mxu0 0.0
    %94 = vmatprep.subr.mxu0 0.0
    %95 = vmatpush1.xpose.msra.mxu0 0.0
    %96 = vmatprep.subr.mxu0 0.0
    %97 = vmatpush1.xpose.msra.mxu0 0.0
    %98 = vmatprep.subr.mxu0 0.0
    %99 = vmatpush1.xpose.msra.mxu0 0.0
    %100 = vmatprep.subr.mxu0 0.0
    %101 = vmatpush1.xpose.msra.mxu0 0.0
    %102 = vmatprep.subr.mxu0 0.0
    %103 = vmatpush1.xpose.msra.mxu0 0.0
    %104 = vmatprep.subr.mxu0 0.0
    %105 = vmatpush1.xpose.msra.mxu0 0.0
    %106 = vmatprep.subr.mxu0 0.0
    %107 = vmatpush1.xpose.msra.mxu0 0.0
    %108 = vmatprep.subr.mxu0 0.0
    %109 = vmatpush1.xpose.msra.mxu0 0.0
    %110 = vmatprep.subr.mxu0 0.0
    %111 = vmatpush1.xpose.msra.mxu0 0.0
    %112 = vmatprep.subr.mxu0 0.0
    %113 = vmatpush1.xpose.msra.mxu0 0.0
    %114 = vmatprep.subr.mxu0 0.0
    %115 = vmatpush1.xpose.msra.mxu0 0.0
    %116 = vmatprep.subr.mxu0 0.0
    %117 = vmatpush1.xpose.msra.mxu0 0.0
    %118 = vmatprep.subr.mxu0 0.0
    %119 = vmatpush1.xpose.msra.mxu0 0.0
    %120 = vmatprep.subr.mxu0 0.0
    %121 = vmatpush1.xpose.msra.mxu0 0.0
    %122 = vmatprep.subr.mxu0 0.0
    %123 = vmatpush1.xpose.msra.mxu0 0.0
    %124 = vmatprep.mubr.f32.mxu0 0.0
    %125 = vmatmul.mubr.f32.gmra.mrb[0].mxu0 %v43
    %v126 = vpop.f32.mrb[0].mxu0
    %v127 = vadd.f32 0.0, %v126
    %v128 = vpop.f32.mrb[0].mxu0
    %129 = vdwg.mxu0
    %v130 = vmul.f32 %v43, %v43
    %131 = vadd.xlane.f32.xlu0 %v130
    %v132 = vpop.xlane.xlu0 %131
    %v133 = vmul.f32 %v44, %v44
    %v134 = vmul.f32 %v45, %v45
    %v135 = vmul.f32 %v46, %v46
    %v136 = vmul.f32 %v47, %v47
    %v137 = vmul.f32 %v48, %v48
    %v138 = vmul.f32 %v49, %v49
    %v139 = vmul.f32 %v50, %v50
    %v140 = vmul.f32 %v51, %v51
    %v141 = vmul.f32 %v52, %v52
    %v142 = vmul.f32 %v53, %v53
    %v143 = vmul.f32 %v54, %v54
    %v144 = vmul.f32 %v55, %v55
    %v145 = vmul.f32 %v56, %v56
    %v146 = vmul.f32 %v57, %v57
    %v147 = vmul.f32 %v58, %v58
    %v148 = vmul.f32 %v59, %v59
    %149 = vmatprep.subr.mxu0 0.0
    %150 = vmatpush1.xpose.msra.mxu0 %v133
    %151 = vmatprep.subr.mxu0 0.0
    %152 = vmatpush1.xpose.msra.mxu0 %v134
    %153 = vmatprep.subr.mxu0 0.0
    %154 = vmatpush1.xpose.msra.mxu0 %v135
    %155 = vmatprep.subr.mxu0 0.0
    %156 = vmatpush1.xpose.msra.mxu0 %v136
    %157 = vmatprep.subr.mxu0 0.0
    %158 = vmatpush1.xpose.msra.mxu0 %v137
    %159 = vmatprep.subr.mxu0 0.0
    %160 = vmatpush1.xpose.msra.mxu0 %v138
    %161 = vmatprep.subr.mxu0 0.0
    %162 = vmatpush1.xpose.msra.mxu0 %v139
    %163 = vmatprep.subr.mxu0 0.0
    %164 = vmatpush1.xpose.msra.mxu0 %v140
    %165 = vmatprep.subr.mxu0 0.0
    %166 = vmatpush1.xpose.msra.mxu0 %v141
    %167 = vmatprep.subr.mxu0 0.0
    %168 = vmatpush1.xpose.msra.mxu0 %v142
    %169 = vmatprep.subr.mxu0 0.0
    %170 = vmatpush1.xpose.msra.mxu0 %v143
    %171 = vmatprep.subr.mxu0 0.0
    %172 = vmatpush1.xpose.msra.mxu0 %v144
    %173 = vmatprep.subr.mxu0 0.0
    %174 = vmatpush1.xpose.msra.mxu0 %v145
    %175 = vmatprep.subr.mxu0 0.0
    %176 = vmatpush1.xpose.msra.mxu0 %v146
    %177 = vmatprep.subr.mxu0 0.0
    %178 = vmatpush1.xpose.msra.mxu0 %v147
    %179 = vmatprep.subr.mxu0 0.0
    %180 = vmatpush1.xpose.msra.mxu0 %v148
    %181 = vmatprep.subr.mxu0 0.0
    %182 = vmatpush1.xpose.msra.mxu0 0.0
    %183 = vmatprep.subr.mxu0 0.0
    %184 = vmatpush1.xpose.msra.mxu0 0.0
    %185 = vmatprep.subr.mxu0 0.0
    %186 = vmatpush1.xpose.msra.mxu0 0.0
    %187 = vmatprep.subr.mxu0 0.0
    %188 = vmatpush1.xpose.msra.mxu0 0.0
    %189 = vmatprep.subr.mxu0 0.0
    %190 = vmatpush1.xpose.msra.mxu0 0.0
    %191 = vmatprep.subr.mxu0 0.0
    %192 = vmatpush1.xpose.msra.mxu0 0.0
    %193 = vmatprep.subr.mxu0 0.0
    %194 = vmatpush1.xpose.msra.mxu0 0.0
    %195 = vmatprep.subr.mxu0 0.0
    %196 = vmatpush1.xpose.msra.mxu0 0.0
    %197 = vmatprep.subr.mxu0 0.0
    %198 = vmatpush1.xpose.msra.mxu0 0.0
    %199 = vmatprep.subr.mxu0 0.0
    %200 = vmatpush1.xpose.msra.mxu0 0.0
    %201 = vmatprep.subr.mxu0 0.0
    %202 = vmatpush1.xpose.msra.mxu0 0.0
    %203 = vmatprep.subr.mxu0 0.0
    %204 = vmatpush1.xpose.msra.mxu0 0.0
    %205 = vmatprep.subr.mxu0 0.0
    %206 = vmatpush1.xpose.msra.mxu0 0.0
    %207 = vmatprep.subr.mxu0 0.0
    %208 = vmatpush1.xpose.msra.mxu0 0.0
    %209 = vmatprep.subr.mxu0 0.0
    %210 = vmatpush1.xpose.msra.mxu0 0.0
    %211 = vmatprep.subr.mxu0 0.0
    %212 = vmatpush1.xpose.msra.mxu0 0.0
    %213 = vmatprep.mubr.f32.mxu0 0.0
    %214 = vmatmul.mubr.f32.gmra.mrb[0].mxu0 1.0
    %v215 = vpop.f32.mrb[0].mxu0
    %v216 = vadd.f32 0.0, %v215
    %v217 = vpop.f32.mrb[0].mxu0
    %218 = vdwg.mxu0
    %v219 = vld [vmem:[#allocation2] sm:$0xff]
    %v220 = vmul.f32 %v127, 2.0
    %v221 = vsub.f32 %v132, %v220
    %v222 = vlaneseq
    %v223 = vshrl.u32 %v222, 7
    %v224 = vsub.s32 0, %v223
    %v225 = vrot.slane %v216, %v224
    %v226 = vadd.f32 %v221, %v225
    %v227 = vadd.f32 %v219, %v226
    %228 = vst [vmem:[#allocation2] sm:$0xff] %v227
    // Predicated region
    $region22: #{tpu_custom_call.1} parent=1 // pred_check
      %p229 = pneg %p38
    $region23: #{tpu_custom_call.1} parent=1 // pred_check_branch
      %231 = sbr.rel (%p229) target = $region25
    $region24: #{tpu_custom_call.1} parent=1 // pred_region
      %v232 = vld [vmem:[#allocation2] sm:$0xff]
      %v233 = vmax.f32 %v232, 0.0
      %v234 = vrsqrt.pop %v233
      %v235 = vmul.f32 %v233, %v234
      %vm236 = vcmp.eq.f32.partialorder %v233, inf
      %v237 = vsel %vm236, %v233, %v235
      %vm238 = vcmp.eq.f32.partialorder %v233, 0.0
      %v239 = vand.u32 %v233, 2147483648
      %v240 = vsel %vm238, %v239, %v237
      %v241 = vmul.f32 %v240, -1.0
      %242 = vst [vmem:[#allocation8] sm:$0xff] %v241
    $region25: #{tpu_custom_call.1} parent=1 // pred_fallthru
      _
    // Predicated region
    $region26: #{tpu_custom_call.1} parent=1 // pred_check
      _
    $region27: #{tpu_custom_call.1} parent=1 // pred_check_branch
      %244 = sbr.rel (0) target = $region29
    $region28: #{tpu_custom_call.1} parent=1 // pred_region
      %s246 = ssub.s32 128, 128
      %247 = vsyncadd [#allocation5], %s246
      %s249 = sshll.u32 [#allocation8], 4
      %s250 = int_to_ptr.vmem [resolvable:$true] %s249
      %252 = dma.vmem_to_hbm [thread:$0]  %s250, 128, %s2, [#allocation5]
    $region29: #{tpu_custom_call.1} parent=1 // pred_fallthru
      _
    // Predicated region
    $region30: #{tpu_custom_call.1} parent=1 // pred_check
      _
    $region31: #{tpu_custom_call.1} parent=1 // pred_check_branch
      %254 = sbr.rel (0) target = $region33
    $region32: #{tpu_custom_call.1} parent=1 // pred_region
      %255 = dma.done [#allocation5], 128
    $region33: #{tpu_custom_call.1} parent=1 // pred_fallthru
      _
    %256 = vsyncpa [#allocation4], 1
    %257 = vsyncpa [#allocation7], 1
    %258 = vsyncpa [#allocation5], 1

</llo_original>
